<compile_context>
chip_gen: v7x
topology: tpu7x:2x2x1
jax: 0.10.0
libtpu: 0.0.40
codegen_flags: <defaults>
</compile_context>

<pallas_src>
import jax
import jax.numpy as jnp
from jax.experimental import pallas as pl
from jax.experimental.pallas import tpu as pltpu


def _round_up(x, m):
    return (x + m - 1) // m * m


def _tpu_generation():
    """Best-effort TPU generation tag ('v5e' / 'v6e' / 'v7x' / None)."""
    try:
        kind = jax.devices()[0].device_kind.lower()
    except Exception:
        return None
    if "v5 lite" in kind or "v5e" in kind or "v5lite" in kind:
        return "v5e"
    if "v6" in kind:
        return "v6e"
    if "7x" in kind or "v7" in kind:
        return "v7x"
    return None


def _vmem_capacity_bytes(gen):
    """Physical VMEM capacity (per TensorCore), with a conservative fallback."""
    try:
        return int(pltpu.get_tpu_info().vmem_capacity_bytes)
    except Exception:
        return (64 << 20) if gen == "v7x" else (128 << 20)


def _make_classifier_kernel(d, k_pad, use_fused):
    """Builds the kernel body. d / k_pad / use_fused are static (trace-time)."""

    def kernel(x1_ref, x2_ref, wt_ref, b_ref, out_ref):
        w_dtype = wt_ref.dtype
        x1 = x1_ref[...]                        # native activation dtype
        x2 = x2_ref[...]
        # Elementwise feature construction (VPU work, hides under MXU pushes).
        diff = jnp.abs(x1 - x2)
        prod = x1 * x2

        def mxu(v):
            # Cast to the (possibly bf16) weight dtype only right before the dot.
            return v if v.dtype == w_dtype else v.astype(w_dtype)

        if use_fused:
            # One K = k_pad matmul keeps the MXU K dimension full (v6e/v7x
            # 256-wide K, or any generation when D is small).
            x = jnp.concatenate([x1, x2, diff, prod], axis=1)        # [tb, 4*d]
            if 4 * d != k_pad:
                x = jnp.pad(x, ((0, 0), (0, k_pad - 4 * d)))         # VMEM-only pad
            acc = jnp.dot(mxu(x), wt_ref[...],
                          preferred_element_type=jnp.float32)
        else:
            # d is a multiple of 128 -> each dot already fills K and the dense
            # weight slices land on (8,128) tile boundaries (zero-cost views).
            acc = jnp.dot(mxu(x1), wt_ref[0 * d:1 * d, :],
                          preferred_element_type=jnp.float32)
            acc = acc + jnp.dot(mxu(x2), wt_ref[1 * d:2 * d, :],
                                preferred_element_type=jnp.float32)
            acc = acc + jnp.dot(mxu(diff), wt_ref[2 * d:3 * d, :],
                                preferred_element_type=jnp.float32)
            acc = acc + jnp.dot(mxu(prod), wt_ref[3 * d:4 * d, :],
                                preferred_element_type=jnp.float32)

        out_ref[...] = (acc + b_ref[...].astype(jnp.float32)).astype(out_ref.dtype)

    return kernel


def prepare_params(weight, bias, x_size, *, param_dtype=None):
    """One-time weight preparation (model load time, not per forward).

    weight: [Y, 4*D] (PyTorch Linear layout), bias: [Y].
    Returns:
      wt_packed: [K_pad, Y_pad], K_pad = round_up(4*D, 128). The four true-D
                 chunks are packed densely on K (rows k*D .. (k+1)*D-1 belong to
                 x1 / x2 / |x1-x2| / x1*x2 respectively); only the total K and Y
                 are zero-padded, keeping the math exact.
      b_packed:  [1, Y_pad]
    param_dtype: optionally repack in bf16 -> halves resident VMEM and feeds the
                 MXU at native bf16 rate on v6e/v7x (only if accuracy allows).
    """
    y_size, in_features = weight.shape
    d = x_size
    assert in_features == 4 * d, (in_features, d)
    k = 4 * d
    k_pad = _round_up(k, 128)
    y_pad = _round_up(y_size, 128)

    wt = weight.T                                        # [4D, Y], done ONCE
    if param_dtype is not None:
        wt = wt.astype(param_dtype)
        bias = bias.astype(param_dtype)
    wt_packed = jnp.pad(wt, ((0, k_pad - k), (0, y_pad - y_size)))
    b_packed = jnp.pad(bias, (0, y_pad - y_size)).reshape(1, y_pad)
    return wt_packed, b_packed


def classifier_forward(x1, x2, wt_packed, b_packed, y_size, *, tb_target=512):
    """x1, x2: [B, D]. wt_packed/b_packed from prepare_params. Returns [B, Y]."""
    B, D = x1.shape
    assert x2.shape == (B, D)
    k_pad, y_pad = wt_packed.shape
    assert k_pad == _round_up(4 * D, 128), (k_pad, D)
    assert tb_target % 32 == 0  # multiple of every sublane packing

    gen = _tpu_generation()
    x_item = jnp.dtype(x1.dtype).itemsize
    w_item = jnp.dtype(wt_packed.dtype).itemsize

    # Batch tile rounded to the dtype's sublane packing (f32:8, bf16:16, i8:32).
    sub = {4: 8, 2: 16, 1: 32}.get(x_item, 8)

    if B > tb_target:
        # Stream batch blocks; Pallas masks the ragged last block (OOB rows read
        # garbage, writes are masked, and the rows are discarded by the final
        # slice — they never contaminate valid rows).
        tb = tb_target
        rows = B
    else:
        # Single block: pad only the tail rows (< sub extra rows) so the block
        # does not overhang the array. No feature-axis padding in HBM.
        tb = _round_up(max(B, sub), sub)
        rows = tb
        if rows != B:
            x1 = jnp.pad(x1, ((0, rows - B), (0, 0)))
            x2 = jnp.pad(x2, ((0, rows - B), (0, 0)))
    grid_b = pl.cdiv(rows, tb)

    # Fused (one K=k_pad matmul) vs 4-dot path:
    #   v5e MXU K is 128 -> 128-multiple D dots already fill it; the in-kernel
    #   concat is pure extra vector-store traffic there. v6e/v7x MXU K is 256.
    mxu_k = 128 if gen == "v5e" else 256
    use_fused = not (D % 128 == 0 and D >= mxu_k)
    kernel = _make_classifier_kernel(D, k_pad, use_fused)

    # Generation-aware VMEM budget: physical capacity minus pipeline headroom.
    vmem_cap = _vmem_capacity_bytes(gen)
    vmem_need = (2 * (k_pad * y_pad + y_pad) * w_item       # weight+bias (<=2 bufs)
                 + 2 * (2 * tb * D * x_item)                # x1, x2 double-buffered
                 + 2 * (tb * y_pad * x_item)                # out double-buffered
                 + (tb * k_pad + tb * y_pad) * 4            # in-kernel temps + f32 acc
                 + (2 << 20))                               # slack
    vmem_limit = int(min(max(vmem_need, 32 << 20),
                         max(vmem_cap - (16 << 20), 32 << 20)))

    # Advisory cost so XLA schedules producers of x1/x2 around the call.
    cost = pl.CostEstimate(
        flops=int(2 * B * (4 * D) * y_size + 3 * B * D),
        transcendentals=0,
        bytes_accessed=int(2 * B * D * x_item
                           + (k_pad * y_pad + y_pad) * w_item
                           + B * y_size * x_item),
    )

    # v7x has 2 TensorCores per chip: ask for a real cross-TC split of the batch
    # grid (weight is duplicated per-TC; budgeted above per TC).
    use_core_parallel = (gen == "v7x" and grid_b >= 2)

    def build_and_run(optimized):
        resident_kwargs = {}
        if optimized:
            # Constant index_map -> never re-fetched; a 2nd buffer is dead weight.
            resident_kwargs = dict(pipeline_mode=pl.Buffered(1))
        batch_sem = (pltpu.CORE_PARALLEL
                     if (optimized and use_core_parallel) else "parallel")
        return pl.pallas_call(
            kernel,
            out_shape=jax.ShapeDtypeStruct((rows, y_pad), x1.dtype),
            grid=(grid_b,),
            in_specs=[
                pl.BlockSpec((tb, D), lambda i: (i, 0)),          # true-D width
                pl.BlockSpec((tb, D), lambda i: (i, 0)),
                pl.BlockSpec((k_pad, y_pad), lambda i: (0, 0),    # VMEM-resident
                             **resident_kwargs),
                pl.BlockSpec((1, y_pad), lambda i: (0, 0),        # VMEM-resident
                             **resident_kwargs),
            ],
            out_specs=pl.BlockSpec((tb, y_pad), lambda i: (i, 0)),
            compiler_params=pltpu.CompilerParams(
                dimension_semantics=(batch_sem,),
                vmem_limit_bytes=vmem_limit,
            ),
            cost_estimate=cost,
        )(x1, x2, wt_packed, b_packed)

    try:
        out_padded = build_and_run(True)
    except Exception:
        # Safe fallback if this Pallas build rejects Buffered(1)/CORE_PARALLEL.
        out_padded = build_and_run(False)

    return out_padded[:B, :y_size]


def _reference(x1, x2, weight, bias):
    x = jnp.concatenate([x1, x2, jnp.abs(x1 - x2), x1 * x2], axis=1)
    return jnp.dot(x, weight.T, precision=jax.lax.Precision.HIGHEST) + bias


if __name__ == "__main__":
    key = jax.random.PRNGKey(0)
    k1, k2, kw, kb, k3, k4 = jax.random.split(key, 6)

    B, D, Y = 8, 32, 16          # batch, x_size, y_size (merge_opt=1 -> in=4*D)

    x1 = jax.random.normal(k1, (B, D), dtype=jnp.float32)
    x2 = jax.random.normal(k2, (B, D), dtype=jnp.float32)

    # PyTorch-Linear-style init: U(-1/sqrt(fan_in), 1/sqrt(fan_in))
    bound = 1.0 / jnp.sqrt(4.0 * D)
    weight = jax.random.uniform(kw, (Y, 4 * D), minval=-bound, maxval=bound,
                                dtype=jnp.float32)
    bias = jax.random.uniform(kb, (Y,), minval=-bound, maxval=bound,
                              dtype=jnp.float32)

    # One-time parameter packing (transpose + dense-K pad, outside the hot path).
    wt_packed, b_packed = prepare_params(weight, bias, D)

    # --- Check 1: tiny batch, single grid step, f32 params ---
    out = jax.block_until_ready(classifier_forward(x1, x2, wt_packed, b_packed, Y))
    ref = _reference(x1, x2, weight, bias)
    assert out.shape == (B, Y), out.shape
    assert jnp.allclose(out, ref, atol=2e-4, rtol=2e-4), \
        f"max err {jnp.max(jnp.abs(out - ref))}"

    # --- Check 2: non-aligned batch (exercises tail-row handling) ---
    B2 = 300
    x1b = jax.random.normal(k3, (B2, D), dtype=jnp.float32)
    x2b = jax.random.normal(k4, (B2, D), dtype=jnp.float32)
    out2 = jax.block_until_ready(classifier_forward(x1b, x2b, wt_packed, b_packed, Y))
    ref2 = _reference(x1b, x2b, weight, bias)
    assert out2.shape == (B2, Y), out2.shape
    assert jnp.allclose(out2, ref2, atol=2e-4, rtol=2e-4), \
        f"max err {jnp.max(jnp.abs(out2 - ref2))}"

    # --- Check 3: bf16-packed params (halved resident VMEM, native MXU rate) ---
    wt_bf16, b_bf16 = prepare_params(weight, bias, D, param_dtype=jnp.bfloat16)
    out3 = jax.block_until_ready(classifier_forward(x1, x2, wt_bf16, b_bf16, Y))
    assert out3.shape == (B, Y), out3.shape
    assert jnp.allclose(out3, ref, atol=3e-2, rtol=3e-2), \
        f"max err (bf16) {jnp.max(jnp.abs(out3 - ref))}"

    print("KERNEL_OK")
</pallas_src>

<mosaic_0001>
module attributes {stable_mosaic.version = 11 : i64} {
  func.func @kernel(%arg0: i32, %arg1: memref<8x32xf32, #tpu.memory_space<vmem>>, %arg2: memref<8x32xf32, #tpu.memory_space<vmem>>, %arg3: memref<128x128xf32, #tpu.memory_space<vmem>>, %arg4: memref<1x128xf32, #tpu.memory_space<vmem>>, %arg5: memref<8x128xf32, #tpu.memory_space<vmem>>) attributes {dimension_semantics = [#tpu.dimension_semantics<parallel>], iteration_bounds = array<i64: 1>, scalar_prefetch = 0 : i64, scratch_operands = 0 : i64, tpu.core_type = #tpu.core_type<tc>, window_params = [{transform_indices = @transform_0, window_bounds = array<i64: 8, 32>}, {transform_indices = @transform_1, window_bounds = array<i64: 8, 32>}, {pipeline_mode = #tpu.pipeline_mode<synchronous>, transform_indices = @transform_2, window_bounds = array<i64: 128, 128>}, {pipeline_mode = #tpu.pipeline_mode<synchronous>, transform_indices = @transform_3, window_bounds = array<i64: 1, 128>}, {transform_indices = @transform_4, window_bounds = array<i64: 8, 128>}]} {
    %c0 = arith.constant 0 : index
    %c0_0 = arith.constant 0 : index
    %0 = vector.load %arg1[%c0, %c0_0] : memref<8x32xf32, #tpu.memory_space<vmem>>, vector<8x32xf32>
    %c0_1 = arith.constant 0 : index
    %c0_2 = arith.constant 0 : index
    %1 = vector.load %arg2[%c0_1, %c0_2] : memref<8x32xf32, #tpu.memory_space<vmem>>, vector<8x32xf32>
    %2 = arith.subf %0, %1 : vector<8x32xf32>
    %3 = math.absf %2 : vector<8x32xf32>
    %4 = arith.mulf %0, %1 : vector<8x32xf32>
    %5 = tpu.concatenate %0, %1, %3, %4 in 1 : vector<8x32xf32>, vector<8x32xf32>, vector<8x32xf32>, vector<8x32xf32> -> vector<8x128xf32>
    %c0_3 = arith.constant 0 : index
    %c0_4 = arith.constant 0 : index
    %6 = vector.load %arg3[%c0_3, %c0_4] : memref<128x128xf32, #tpu.memory_space<vmem>>, vector<128x128xf32>
    %cst = arith.constant dense<0.000000e+00> : vector<8x128xf32>
    %7 = tpu.matmul %5, %6, %cst {dimension_numbers = #tpu.dot_dimension_numbers<[1], [0], [0], [1], [0, 0, 1, 1], [], []>} : vector<8x128xf32>, vector<128x128xf32>, vector<8x128xf32> -> vector<8x128xf32>
    %c0_5 = arith.constant 0 : index
    %c0_6 = arith.constant 0 : index
    %8 = vector.load %arg4[%c0_5, %c0_6] : memref<1x128xf32, #tpu.memory_space<vmem>>, vector<1x128xf32>
    %9 = vector.broadcast %8 : vector<1x128xf32> to vector<8x128xf32>
    %10 = arith.addf %7, %9 : vector<8x128xf32>
    %c0_7 = arith.constant 0 : index
    %c0_8 = arith.constant 0 : index
    %11 = vector.load %arg5[%c0_7, %c0_8] : memref<8x128xf32, #tpu.memory_space<vmem>>, vector<8x128xf32>
    tpu.vector_store %arg5[%c0_7, %c0_8], %10 {strides = array<i32>} : memref<8x128xf32, #tpu.memory_space<vmem>>, vector<8x128xf32>,
    return
  }
  func.func @transform_0(%arg0: i32) -> (i32, i32) {
    %c0_i32 = arith.constant 0 : i32
    %c0_i32_0 = arith.constant 0 : i32
    return %arg0, %c0_i32 : i32, i32
  }
  func.func @transform_1(%arg0: i32) -> (i32, i32) {
    %c0_i32 = arith.constant 0 : i32
    %c0_i32_0 = arith.constant 0 : i32
    return %arg0, %c0_i32 : i32, i32
  }
  func.func @transform_2(%arg0: i32) -> (i32, i32) {
    %c0_i32 = arith.constant 0 : i32
    %c0_i32_0 = arith.constant 0 : i32
    %c0_i32_1 = arith.constant 0 : i32
    return %c0_i32, %c0_i32_0 : i32, i32
  }
  func.func @transform_3(%arg0: i32) -> (i32, i32) {
    %c0_i32 = arith.constant 0 : i32
    %c0_i32_0 = arith.constant 0 : i32
    %c0_i32_1 = arith.constant 0 : i32
    return %c0_i32, %c0_i32_0 : i32, i32
  }
  func.func @transform_4(%arg0: i32) -> (i32, i32) {
    %c0_i32 = arith.constant 0 : i32
    %c0_i32_0 = arith.constant 0 : i32
    return %arg0, %c0_i32 : i32, i32
  }
}

module attributes {stable_mosaic.version = 11 : i64} {
  func.func @kernel(%arg0: i32, %arg1: memref<8x32xf32, #tpu.memory_space<vmem>>, %arg2: memref<8x32xf32, #tpu.memory_space<vmem>>, %arg3: memref<128x128xf32, #tpu.memory_space<vmem>>, %arg4: memref<1x128xf32, #tpu.memory_space<vmem>>, %arg5: memref<8x128xf32, #tpu.memory_space<vmem>>) attributes {dimension_semantics = [#tpu.dimension_semantics<parallel>], iteration_bounds = array<i64: 1>, scalar_prefetch = 0 : i64, scratch_operands = 0 : i64, tpu.core_type = #tpu.core_type<tc>, window_params = [{transform_indices = @transform_0, window_bounds = array<i64: 8, 32>}, {transform_indices = @transform_1, window_bounds = array<i64: 8, 32>}, {pipeline_mode = #tpu.pipeline_mode<synchronous>, transform_indices = @transform_2, window_bounds = array<i64: 128, 128>}, {pipeline_mode = #tpu.pipeline_mode<synchronous>, transform_indices = @transform_3, window_bounds = array<i64: 1, 128>}, {transform_indices = @transform_4, window_bounds = array<i64: 8, 128>}]} {
    %c0 = arith.constant 0 : index
    %c0_0 = arith.constant 0 : index
    %0 = vector.load %arg1[%c0, %c0_0] : memref<8x32xf32, #tpu.memory_space<vmem>>, vector<8x32xf32>
    %c0_1 = arith.constant 0 : index
    %c0_2 = arith.constant 0 : index
    %1 = vector.load %arg2[%c0_1, %c0_2] : memref<8x32xf32, #tpu.memory_space<vmem>>, vector<8x32xf32>
    %2 = arith.subf %0, %1 : vector<8x32xf32>
    %3 = math.absf %2 : vector<8x32xf32>
    %4 = arith.mulf %0, %1 : vector<8x32xf32>
    %5 = tpu.concatenate %0, %1, %3, %4 in 1 : vector<8x32xf32>, vector<8x32xf32>, vector<8x32xf32>, vector<8x32xf32> -> vector<8x128xf32>
    %c0_3 = arith.constant 0 : index
    %c0_4 = arith.constant 0 : index
    %6 = vector.load %arg3[%c0_3, %c0_4] : memref<128x128xf32, #tpu.memory_space<vmem>>, vector<128x128xf32>
    %cst = arith.constant dense<0.000000e+00> : vector<8x128xf32>
    %7 = tpu.matmul %5, %6, %cst {dimension_numbers = #tpu.dot_dimension_numbers<[1], [0], [0], [1], [0, 0, 1, 1], [], []>} : vector<8x128xf32>, vector<128x128xf32>, vector<8x128xf32> -> vector<8x128xf32>
    %c0_5 = arith.constant 0 : index
    %c0_6 = arith.constant 0 : index
    %8 = vector.load %arg4[%c0_5, %c0_6] : memref<1x128xf32, #tpu.memory_space<vmem>>, vector<1x128xf32>
    %9 = vector.broadcast %8 : vector<1x128xf32> to vector<8x128xf32>
    %10 = arith.addf %7, %9 : vector<8x128xf32>
    %c0_7 = arith.constant 0 : index
    %c0_8 = arith.constant 0 : index
    %11 = vector.load %arg5[%c0_7, %c0_8] : memref<8x128xf32, #tpu.memory_space<vmem>>, vector<8x128xf32>
    tpu.vector_store %arg5[%c0_7, %c0_8], %10 {strides = array<i32>} : memref<8x128xf32, #tpu.memory_space<vmem>>, vector<8x128xf32>,
    return
  }
  func.func @transform_0(%arg0: i32) -> (i32, i32) {
    %c0_i32 = arith.constant 0 : i32
    %c0_i32_0 = arith.constant 0 : i32
    return %arg0, %c0_i32 : i32, i32
  }
  func.func @transform_1(%arg0: i32) -> (i32, i32) {
    %c0_i32 = arith.constant 0 : i32
    %c0_i32_0 = arith.constant 0 : i32
    return %arg0, %c0_i32 : i32, i32
  }
  func.func @transform_2(%arg0: i32) -> (i32, i32) {
    %c0_i32 = arith.constant 0 : i32
    %c0_i32_0 = arith.constant 0 : i32
    %c0_i32_1 = arith.constant 0 : i32
    return %c0_i32, %c0_i32_0 : i32, i32
  }
  func.func @transform_3(%arg0: i32) -> (i32, i32) {
    %c0_i32 = arith.constant 0 : i32
    %c0_i32_0 = arith.constant 0 : i32
    %c0_i32_1 = arith.constant 0 : i32
    return %c0_i32, %c0_i32_0 : i32, i32
  }
  func.func @transform_4(%arg0: i32) -> (i32, i32) {
    %c0_i32 = arith.constant 0 : i32
    %c0_i32_0 = arith.constant 0 : i32
    return %arg0, %c0_i32 : i32, i32
  }
}

</mosaic_0001>

<llo_original>
// kernel: tpu_custom_call.1
$region0: #{tpu_custom_call.1}
  #allocation0 [shape = 'u32[]', space=smem, size = 0x4, offset = 0x4, fixed_abs, tag = 'smem constant byte address 0x4 - core index']
  #allocation1 [shape = 'u32[144,128]{1,0:T(1,128)}', space=vmem, size = 0x12000, scoped, tag = 'internal scratch']
  %s0 = inlined_call_operand.hbm [shape: f32[8,32], index: 0, kind: input, shape index: {}]
  %s1 = inlined_call_operand.hbm [shape: f32[8,32], index: 1, kind: input, shape index: {}]
  %s2 = inlined_call_operand.hbm [shape: f32[128,128], index: 2, kind: input, shape index: {}]
  %s3 = inlined_call_operand.vmem [shape: f32[1,128], index: 3, kind: input, shape index: {}]
  %s4 = inlined_call_operand.hbm [shape: f32[8,128], index: 4, kind: output, shape index: {}]
  %s5 = sld [smem:[#allocation0]]
  $region38: #{tpu_custom_call.1} parent=0
    _
  %s7 = ssub.s32 1, %s5
  %s8 = scalar_select 0, %s7, %s5
  $region1: #{tpu_custom_call.1} parent=0
    #allocation2 [shape = 'u8[4096]{0}', space=vmem, size = 0x1000, scoped, tag = 'input window, operand 0, single buffered']
    #allocation3 [shape = 's32[1]{0}', space=sflag, size = 0x4, scoped, tag = 'scoped memory for tpu_custom_call.1']
    #allocation4 [shape = 's32[1]{0}', space=sflag, size = 0x4, scoped, tag = 'scoped memory for tpu_custom_call.1']
    #allocation5 [shape = 'u8[4096]{0}', space=vmem, size = 0x1000, scoped, tag = 'input window, operand 1, single buffered']
    #allocation6 [shape = 's32[1]{0}', space=sflag, size = 0x4, scoped, tag = 'scoped memory for tpu_custom_call.1']
    #allocation7 [shape = 'u8[65536]{0}', space=vmem, size = 0x10000, scoped, tag = 'input window, operand 2, single buffered']
    #allocation8 [shape = 'u8[4096]{0}', space=vmem, size = 0x1000, scoped, tag = 'output window, operand 0, single buffered']
    %9 = vsyncpa [#allocation3], 0
    %10 = vsyncpa [#allocation6], 0
    %11 = vsyncpa [#allocation4], 0
    // Predicated region
    $region2: #{tpu_custom_call.1} parent=1 // pred_check
      _
    $region3: #{tpu_custom_call.1} parent=1 // pred_check_branch
      %13 = sbr.rel (0) target = $region5
    $region4: #{tpu_custom_call.1} parent=1 // pred_region
      %s15 = ssub.s32 128, 128
      %16 = vsyncadd [#allocation3], %s15
      %s18 = sshll.u32 [#allocation2], 4
      %s19 = int_to_ptr.vmem [resolvable:$true] %s18
      %21 = dma.hbm_to_vmem [thread:$0]  %s0, 128, %s19, [#allocation3]
    $region5: #{tpu_custom_call.1} parent=1 // pred_fallthru
      _
    // Predicated region
    $region6: #{tpu_custom_call.1} parent=1 // pred_check
      _
    $region7: #{tpu_custom_call.1} parent=1 // pred_check_branch
      %23 = sbr.rel (0) target = $region9
    $region8: #{tpu_custom_call.1} parent=1 // pred_region
      %s25 = ssub.s32 128, 128
      %26 = vsyncadd [#allocation6], %s25
      %s28 = sshll.u32 [#allocation5], 4
      %s29 = int_to_ptr.vmem [resolvable:$true] %s28
      %31 = dma.hbm_to_vmem [thread:$0]  %s1, 128, %s29, [#allocation6]
    $region9: #{tpu_custom_call.1} parent=1 // pred_fallthru
      _
    // Predicated region
    $region10: #{tpu_custom_call.1} parent=1 // pred_check
      _
    $region11: #{tpu_custom_call.1} parent=1 // pred_check_branch
      %33 = sbr.rel (0) target = $region13
    $region12: #{tpu_custom_call.1} parent=1 // pred_region
      %s35 = ssub.s32 2048, 2048
      %36 = vsyncadd [#allocation6], %s35
      %s37 = sshll.u32 [#allocation7], 4
      %s38 = int_to_ptr.vmem [resolvable:$true] %s37
      %43 = dma.hbm_to_vmem [thread:$0]  %s2, 2048, %s38, [#allocation6], 128, 128, 8
    $region13: #{tpu_custom_call.1} parent=1 // pred_fallthru
      _
    // Predicated region
    $region14: #{tpu_custom_call.1} parent=1 // pred_check
      _
    $region15: #{tpu_custom_call.1} parent=1 // pred_check_branch
      %45 = sbr.rel (0) target = $region17
    $region16: #{tpu_custom_call.1} parent=1 // pred_region
      _
    $region17: #{tpu_custom_call.1} parent=1 // pred_fallthru
      _
    // Predicated region
    $region18: #{tpu_custom_call.1} parent=1 // pred_check
      _
    $region19: #{tpu_custom_call.1} parent=1 // pred_check_branch
      %47 = sbr.rel (0) target = $region21
    $region20: #{tpu_custom_call.1} parent=1 // pred_region
      %48 = dma.done [#allocation3], 128
    $region21: #{tpu_custom_call.1} parent=1 // pred_fallthru
      _
    // Predicated region
    $region22: #{tpu_custom_call.1} parent=1 // pred_check
      _
    $region23: #{tpu_custom_call.1} parent=1 // pred_check_branch
      %50 = sbr.rel (0) target = $region25
    $region24: #{tpu_custom_call.1} parent=1 // pred_region
      %51 = dma.done [#allocation6], 128
    $region25: #{tpu_custom_call.1} parent=1 // pred_fallthru
      _
    // Predicated region
    $region26: #{tpu_custom_call.1} parent=1 // pred_check
      _
    $region27: #{tpu_custom_call.1} parent=1 // pred_check_branch
      %53 = sbr.rel (0) target = $region29
    $region28: #{tpu_custom_call.1} parent=1 // pred_region
      %54 = dma.done [#allocation6], 2048
    $region29: #{tpu_custom_call.1} parent=1 // pred_fallthru
      _
    %v55 = vld [vmem:[#allocation2] sm:$0xff]
    %v56 = vld [vmem:[#allocation5] sm:$0xff]
    %v57 = vsub.f32 %v55, %v56
    %v58 = vand.u32 2147483647, %v57
    %v59 = vmul.f32 %v55, %v56
    %61 = vrot.lane.b32.xlu0 %v56, 32
    %v62 = vpop.permute.xlu0 %61
    %65 = vrot.lane.b32.xlu0 %v58, 64
    %v66 = vpop.permute.xlu0 %65
    %69 = vrot.lane.b32.xlu0 %v59, 96
    %v70 = vpop.permute.xlu0 %69
    %vm72 = vcmask 261120
    %v73 = vsel %vm72, %v55, %v62
    %vm74 = vcmask 523264
    %v75 = vsel %vm74, %v73, %v66
    %vm76 = vcmask 785408
    %v77 = vsel %vm76, %v75, %v70
    %v78 = vld [vmem:[#allocation7] sm:$0xff]
    %v79 = vld [vmem:[#allocation7 + $0x8] sm:$0xff]
    %v80 = vld [vmem:[#allocation7 + $0x10] sm:$0xff]
    %v81 = vld [vmem:[#allocation7 + $0x18] sm:$0xff]
    %v82 = vld [vmem:[#allocation7 + $0x20] sm:$0xff]
    %v83 = vld [vmem:[#allocation7 + $0x28] sm:$0xff]
    %v84 = vld [vmem:[#allocation7 + $0x30] sm:$0xff]
    %v85 = vld [vmem:[#allocation7 + $0x38] sm:$0xff]
    %v86 = vld [vmem:[#allocation7 + $0x40] sm:$0xff]
    %v87 = vld [vmem:[#allocation7 + $0x48] sm:$0xff]
    %v88 = vld [vmem:[#allocation7 + $0x50] sm:$0xff]
    %v89 = vld [vmem:[#allocation7 + $0x58] sm:$0xff]
    %v90 = vld [vmem:[#allocation7 + $0x60] sm:$0xff]
    %v91 = vld [vmem:[#allocation7 + $0x68] sm:$0xff]
    %v92 = vld [vmem:[#allocation7 + $0x70] sm:$0xff]
    %v93 = vld [vmem:[#allocation7 + $0x78] sm:$0xff]
    %v94 = vld [vmem:[%s3] sm:$0x1]
    %v96 = vlaneseq
    %v97 = vshrl.u32 %v96, 7
    %v98 = vsub.s32 0, %v97
    %v99 = vrot.slane %v94, %v98
    %101 = vmatprep.subr.mxu0 0.0
    %102 = vmatpush1.msra.mxu0 %v78
    %103 = vmatprep.subr.mxu0 0.0
    %104 = vmatpush1.msra.mxu0 %v79
    %105 = vmatprep.subr.mxu0 0.0
    %106 = vmatpush1.msra.mxu0 %v80
    %107 = vmatprep.subr.mxu0 0.0
    %108 = vmatpush1.msra.mxu0 %v81
    %109 = vmatprep.subr.mxu0 0.0
    %110 = vmatpush1.msra.mxu0 %v82
    %111 = vmatprep.subr.mxu0 0.0
    %112 = vmatpush1.msra.mxu0 %v83
    %113 = vmatprep.subr.mxu0 0.0
    %114 = vmatpush1.msra.mxu0 %v84
    %115 = vmatprep.subr.mxu0 0.0
    %116 = vmatpush1.msra.mxu0 %v85
    %117 = vmatprep.subr.mxu0 0.0
    %118 = vmatpush1.msra.mxu0 %v86
    %119 = vmatprep.subr.mxu0 0.0
    %120 = vmatpush1.msra.mxu0 %v87
    %121 = vmatprep.subr.mxu0 0.0
    %122 = vmatpush1.msra.mxu0 %v88
    %123 = vmatprep.subr.mxu0 0.0
    %124 = vmatpush1.msra.mxu0 %v89
    %125 = vmatprep.subr.mxu0 0.0
    %126 = vmatpush1.msra.mxu0 %v90
    %127 = vmatprep.subr.mxu0 0.0
    %128 = vmatpush1.msra.mxu0 %v91
    %129 = vmatprep.subr.mxu0 0.0
    %130 = vmatpush1.msra.mxu0 %v92
    %131 = vmatprep.subr.mxu0 0.0
    %132 = vmatpush1.msra.mxu0 %v93
    %133 = vmatprep.subr.mxu0 0.0
    %134 = vmatpush1.msra.mxu0 0.0
    %135 = vmatprep.subr.mxu0 0.0
    %136 = vmatpush1.msra.mxu0 0.0
    %137 = vmatprep.subr.mxu0 0.0
    %138 = vmatpush1.msra.mxu0 0.0
    %139 = vmatprep.subr.mxu0 0.0
    %140 = vmatpush1.msra.mxu0 0.0
    %141 = vmatprep.subr.mxu0 0.0
    %142 = vmatpush1.msra.mxu0 0.0
    %143 = vmatprep.subr.mxu0 0.0
    %144 = vmatpush1.msra.mxu0 0.0
    %145 = vmatprep.subr.mxu0 0.0
    %146 = vmatpush1.msra.mxu0 0.0
    %147 = vmatprep.subr.mxu0 0.0
    %148 = vmatpush1.msra.mxu0 0.0
    %149 = vmatprep.subr.mxu0 0.0
    %150 = vmatpush1.msra.mxu0 0.0
    %151 = vmatprep.subr.mxu0 0.0
    %152 = vmatpush1.msra.mxu0 0.0
    %153 = vmatprep.subr.mxu0 0.0
    %154 = vmatpush1.msra.mxu0 0.0
    %155 = vmatprep.subr.mxu0 0.0
    %156 = vmatpush1.msra.mxu0 0.0
    %157 = vmatprep.subr.mxu0 0.0
    %158 = vmatpush1.msra.mxu0 0.0
    %159 = vmatprep.subr.mxu0 0.0
    %160 = vmatpush1.msra.mxu0 0.0
    %161 = vmatprep.subr.mxu0 0.0
    %162 = vmatpush1.msra.mxu0 0.0
    %163 = vmatprep.subr.mxu0 0.0
    %164 = vmatpush1.msra.mxu0 0.0
    %165 = vmatprep.mubr.f32.mxu0 0.0
    %166 = vmatmul.mubr.f32.gmra.mrb[0].mxu0 %v77
    %v167 = vpop.f32.mrb[0].mxu0
    %v168 = vadd.f32 %v99, %v167
    %v169 = vpop.f32.mrb[0].mxu0
    %170 = vdwg.mxu0
    %171 = vst [vmem:[#allocation8] sm:$0xff] %v168
    // Predicated region
    $region30: #{tpu_custom_call.1} parent=1 // pred_check
      _
    $region31: #{tpu_custom_call.1} parent=1 // pred_check_branch
      %173 = sbr.rel (0) target = $region33
    $region32: #{tpu_custom_call.1} parent=1 // pred_region
      %s175 = ssub.s32 128, 128
      %176 = vsyncadd [#allocation4], %s175
      %s178 = sshll.u32 [#allocation8], 4
      %s179 = int_to_ptr.vmem [resolvable:$true] %s178
      %181 = dma.vmem_to_hbm [thread:$0]  %s179, 128, %s4, [#allocation4]
    $region33: #{tpu_custom_call.1} parent=1 // pred_fallthru
      _
    // Predicated region
    $region34: #{tpu_custom_call.1} parent=1 // pred_check
      _
    $region35: #{tpu_custom_call.1} parent=1 // pred_check_branch
      %183 = sbr.rel (0) target = $region37
    $region36: #{tpu_custom_call.1} parent=1 // pred_region
      %184 = dma.done [#allocation4], 128
    $region37: #{tpu_custom_call.1} parent=1 // pred_fallthru
      _
    %185 = vsyncpa [#allocation3], 1
    %186 = vsyncpa [#allocation6], 1
    %187 = vsyncpa [#allocation4], 1

// kernel: tpu_custom_call.1
$region0: #{tpu_custom_call.1}
  #allocation0 [shape = 'u32[]', space=smem, size = 0x4, offset = 0x4, fixed_abs, tag = 'smem constant byte address 0x4 - core index']
  #allocation1 [shape = 'u32[144,128]{1,0:T(1,128)}', space=vmem, size = 0x12000, scoped, tag = 'internal scratch']
  %s0 = inlined_call_operand.hbm [shape: f32[8,32], index: 0, kind: input, shape index: {}]
  %s1 = inlined_call_operand.hbm [shape: f32[8,32], index: 1, kind: input, shape index: {}]
  %s2 = inlined_call_operand.hbm [shape: f32[128,128], index: 2, kind: input, shape index: {}]
  %s3 = inlined_call_operand.vmem [shape: f32[1,128], index: 3, kind: input, shape index: {}]
  %s4 = inlined_call_operand.hbm [shape: f32[8,128], index: 4, kind: output, shape index: {}]
  %s5 = sld [smem:[#allocation0]]
  $region38: #{tpu_custom_call.1} parent=0
    _
  %s7 = ssub.s32 1, %s5
  %s8 = scalar_select 0, %s7, %s5
  $region1: #{tpu_custom_call.1} parent=0
    #allocation2 [shape = 'u8[4096]{0}', space=vmem, size = 0x1000, scoped, tag = 'input window, operand 0, single buffered']
    #allocation3 [shape = 's32[1]{0}', space=sflag, size = 0x4, scoped, tag = 'scoped memory for tpu_custom_call.1']
    #allocation4 [shape = 's32[1]{0}', space=sflag, size = 0x4, scoped, tag = 'scoped memory for tpu_custom_call.1']
    #allocation5 [shape = 'u8[4096]{0}', space=vmem, size = 0x1000, scoped, tag = 'input window, operand 1, single buffered']
    #allocation6 [shape = 's32[1]{0}', space=sflag, size = 0x4, scoped, tag = 'scoped memory for tpu_custom_call.1']
    #allocation7 [shape = 'u8[65536]{0}', space=vmem, size = 0x10000, scoped, tag = 'input window, operand 2, single buffered']
    #allocation8 [shape = 'u8[4096]{0}', space=vmem, size = 0x1000, scoped, tag = 'output window, operand 0, single buffered']
    %9 = vsyncpa [#allocation3], 0
    %10 = vsyncpa [#allocation6], 0
    %11 = vsyncpa [#allocation4], 0
    // Predicated region
    $region2: #{tpu_custom_call.1} parent=1 // pred_check
      _
    $region3: #{tpu_custom_call.1} parent=1 // pred_check_branch
      %13 = sbr.rel (0) target = $region5
    $region4: #{tpu_custom_call.1} parent=1 // pred_region
      %s15 = ssub.s32 128, 128
      %16 = vsyncadd [#allocation3], %s15
      %s18 = sshll.u32 [#allocation2], 4
      %s19 = int_to_ptr.vmem [resolvable:$true] %s18
      %21 = dma.hbm_to_vmem [thread:$0]  %s0, 128, %s19, [#allocation3]
    $region5: #{tpu_custom_call.1} parent=1 // pred_fallthru
      _
    // Predicated region
    $region6: #{tpu_custom_call.1} parent=1 // pred_check
      _
    $region7: #{tpu_custom_call.1} parent=1 // pred_check_branch
      %23 = sbr.rel (0) target = $region9
    $region8: #{tpu_custom_call.1} parent=1 // pred_region
      %s25 = ssub.s32 128, 128
      %26 = vsyncadd [#allocation6], %s25
      %s28 = sshll.u32 [#allocation5], 4
      %s29 = int_to_ptr.vmem [resolvable:$true] %s28
      %31 = dma.hbm_to_vmem [thread:$0]  %s1, 128, %s29, [#allocation6]
    $region9: #{tpu_custom_call.1} parent=1 // pred_fallthru
      _
    // Predicated region
    $region10: #{tpu_custom_call.1} parent=1 // pred_check
      _
    $region11: #{tpu_custom_call.1} parent=1 // pred_check_branch
      %33 = sbr.rel (0) target = $region13
    $region12: #{tpu_custom_call.1} parent=1 // pred_region
      %s35 = ssub.s32 2048, 2048
      %36 = vsyncadd [#allocation6], %s35
      %s37 = sshll.u32 [#allocation7], 4
      %s38 = int_to_ptr.vmem [resolvable:$true] %s37
      %43 = dma.hbm_to_vmem [thread:$0]  %s2, 2048, %s38, [#allocation6], 128, 128, 8
    $region13: #{tpu_custom_call.1} parent=1 // pred_fallthru
      _
    // Predicated region
    $region14: #{tpu_custom_call.1} parent=1 // pred_check
      _
    $region15: #{tpu_custom_call.1} parent=1 // pred_check_branch
      %45 = sbr.rel (0) target = $region17
    $region16: #{tpu_custom_call.1} parent=1 // pred_region
      _
    $region17: #{tpu_custom_call.1} parent=1 // pred_fallthru
      _
    // Predicated region
    $region18: #{tpu_custom_call.1} parent=1 // pred_check
      _
    $region19: #{tpu_custom_call.1} parent=1 // pred_check_branch
      %47 = sbr.rel (0) target = $region21
    $region20: #{tpu_custom_call.1} parent=1 // pred_region
      %48 = dma.done [#allocation3], 128
    $region21: #{tpu_custom_call.1} parent=1 // pred_fallthru
      _
    // Predicated region
    $region22: #{tpu_custom_call.1} parent=1 // pred_check
      _
    $region23: #{tpu_custom_call.1} parent=1 // pred_check_branch
      %50 = sbr.rel (0) target = $region25
    $region24: #{tpu_custom_call.1} parent=1 // pred_region
      %51 = dma.done [#allocation6], 128
    $region25: #{tpu_custom_call.1} parent=1 // pred_fallthru
      _
    // Predicated region
    $region26: #{tpu_custom_call.1} parent=1 // pred_check
      _
    $region27: #{tpu_custom_call.1} parent=1 // pred_check_branch
      %53 = sbr.rel (0) target = $region29
    $region28: #{tpu_custom_call.1} parent=1 // pred_region
      %54 = dma.done [#allocation6], 2048
    $region29: #{tpu_custom_call.1} parent=1 // pred_fallthru
      _
    %v55 = vld [vmem:[#allocation2] sm:$0xff]
    %v56 = vld [vmem:[#allocation5] sm:$0xff]
    %v57 = vsub.f32 %v55, %v56
    %v58 = vand.u32 2147483647, %v57
    %v59 = vmul.f32 %v55, %v56
    %61 = vrot.lane.b32.xlu0 %v56, 32
    %v62 = vpop.permute.xlu0 %61
    %65 = vrot.lane.b32.xlu0 %v58, 64
    %v66 = vpop.permute.xlu0 %65
    %69 = vrot.lane.b32.xlu0 %v59, 96
    %v70 = vpop.permute.xlu0 %69
    %vm72 = vcmask 261120
    %v73 = vsel %vm72, %v55, %v62
    %vm74 = vcmask 523264
    %v75 = vsel %vm74, %v73, %v66
    %vm76 = vcmask 785408
    %v77 = vsel %vm76, %v75, %v70
    %v78 = vld [vmem:[#allocation7] sm:$0xff]
    %v79 = vld [vmem:[#allocation7 + $0x8] sm:$0xff]
    %v80 = vld [vmem:[#allocation7 + $0x10] sm:$0xff]
    %v81 = vld [vmem:[#allocation7 + $0x18] sm:$0xff]
    %v82 = vld [vmem:[#allocation7 + $0x20] sm:$0xff]
    %v83 = vld [vmem:[#allocation7 + $0x28] sm:$0xff]
    %v84 = vld [vmem:[#allocation7 + $0x30] sm:$0xff]
    %v85 = vld [vmem:[#allocation7 + $0x38] sm:$0xff]
    %v86 = vld [vmem:[#allocation7 + $0x40] sm:$0xff]
    %v87 = vld [vmem:[#allocation7 + $0x48] sm:$0xff]
    %v88 = vld [vmem:[#allocation7 + $0x50] sm:$0xff]
    %v89 = vld [vmem:[#allocation7 + $0x58] sm:$0xff]
    %v90 = vld [vmem:[#allocation7 + $0x60] sm:$0xff]
    %v91 = vld [vmem:[#allocation7 + $0x68] sm:$0xff]
    %v92 = vld [vmem:[#allocation7 + $0x70] sm:$0xff]
    %v93 = vld [vmem:[#allocation7 + $0x78] sm:$0xff]
    %v94 = vld [vmem:[%s3] sm:$0x1]
    %v96 = vlaneseq
    %v97 = vshrl.u32 %v96, 7
    %v98 = vsub.s32 0, %v97
    %v99 = vrot.slane %v94, %v98
    %101 = vmatprep.subr.mxu0 0.0
    %102 = vmatpush1.msra.mxu0 %v78
    %103 = vmatprep.subr.mxu0 0.0
    %104 = vmatpush1.msra.mxu0 %v79
    %105 = vmatprep.subr.mxu0 0.0
    %106 = vmatpush1.msra.mxu0 %v80
    %107 = vmatprep.subr.mxu0 0.0
    %108 = vmatpush1.msra.mxu0 %v81
    %109 = vmatprep.subr.mxu0 0.0
    %110 = vmatpush1.msra.mxu0 %v82
    %111 = vmatprep.subr.mxu0 0.0
    %112 = vmatpush1.msra.mxu0 %v83
    %113 = vmatprep.subr.mxu0 0.0
    %114 = vmatpush1.msra.mxu0 %v84
    %115 = vmatprep.subr.mxu0 0.0
    %116 = vmatpush1.msra.mxu0 %v85
    %117 = vmatprep.subr.mxu0 0.0
    %118 = vmatpush1.msra.mxu0 %v86
    %119 = vmatprep.subr.mxu0 0.0
    %120 = vmatpush1.msra.mxu0 %v87
    %121 = vmatprep.subr.mxu0 0.0
    %122 = vmatpush1.msra.mxu0 %v88
    %123 = vmatprep.subr.mxu0 0.0
    %124 = vmatpush1.msra.mxu0 %v89
    %125 = vmatprep.subr.mxu0 0.0
    %126 = vmatpush1.msra.mxu0 %v90
    %127 = vmatprep.subr.mxu0 0.0
    %128 = vmatpush1.msra.mxu0 %v91
    %129 = vmatprep.subr.mxu0 0.0
    %130 = vmatpush1.msra.mxu0 %v92
    %131 = vmatprep.subr.mxu0 0.0
    %132 = vmatpush1.msra.mxu0 %v93
    %133 = vmatprep.subr.mxu0 0.0
    %134 = vmatpush1.msra.mxu0 0.0
    %135 = vmatprep.subr.mxu0 0.0
    %136 = vmatpush1.msra.mxu0 0.0
    %137 = vmatprep.subr.mxu0 0.0
    %138 = vmatpush1.msra.mxu0 0.0
    %139 = vmatprep.subr.mxu0 0.0
    %140 = vmatpush1.msra.mxu0 0.0
    %141 = vmatprep.subr.mxu0 0.0
    %142 = vmatpush1.msra.mxu0 0.0
    %143 = vmatprep.subr.mxu0 0.0
    %144 = vmatpush1.msra.mxu0 0.0
    %145 = vmatprep.subr.mxu0 0.0
    %146 = vmatpush1.msra.mxu0 0.0
    %147 = vmatprep.subr.mxu0 0.0
    %148 = vmatpush1.msra.mxu0 0.0
    %149 = vmatprep.subr.mxu0 0.0
    %150 = vmatpush1.msra.mxu0 0.0
    %151 = vmatprep.subr.mxu0 0.0
    %152 = vmatpush1.msra.mxu0 0.0
    %153 = vmatprep.subr.mxu0 0.0
    %154 = vmatpush1.msra.mxu0 0.0
    %155 = vmatprep.subr.mxu0 0.0
    %156 = vmatpush1.msra.mxu0 0.0
    %157 = vmatprep.subr.mxu0 0.0
    %158 = vmatpush1.msra.mxu0 0.0
    %159 = vmatprep.subr.mxu0 0.0
    %160 = vmatpush1.msra.mxu0 0.0
    %161 = vmatprep.subr.mxu0 0.0
    %162 = vmatpush1.msra.mxu0 0.0
    %163 = vmatprep.subr.mxu0 0.0
    %164 = vmatpush1.msra.mxu0 0.0
    %165 = vmatprep.mubr.f32.mxu0 0.0
    %166 = vmatmul.mubr.f32.gmra.mrb[0].mxu0 %v77
    %v167 = vpop.f32.mrb[0].mxu0
    %v168 = vadd.f32 %v99, %v167
    %v169 = vpop.f32.mrb[0].mxu0
    %170 = vdwg.mxu0
    %171 = vst [vmem:[#allocation8] sm:$0xff] %v168
    // Predicated region
    $region30: #{tpu_custom_call.1} parent=1 // pred_check
      _
    $region31: #{tpu_custom_call.1} parent=1 // pred_check_branch
      %173 = sbr.rel (0) target = $region33
    $region32: #{tpu_custom_call.1} parent=1 // pred_region
      %s175 = ssub.s32 128, 128
      %176 = vsyncadd [#allocation4], %s175
      %s178 = sshll.u32 [#allocation8], 4
      %s179 = int_to_ptr.vmem [resolvable:$true] %s178
      %181 = dma.vmem_to_hbm [thread:$0]  %s179, 128, %s4, [#allocation4]
    $region33: #{tpu_custom_call.1} parent=1 // pred_fallthru
      _
    // Predicated region
    $region34: #{tpu_custom_call.1} parent=1 // pred_check
      _
    $region35: #{tpu_custom_call.1} parent=1 // pred_check_branch
      %183 = sbr.rel (0) target = $region37
    $region36: #{tpu_custom_call.1} parent=1 // pred_region
      %184 = dma.done [#allocation4], 128
    $region37: #{tpu_custom_call.1} parent=1 // pred_fallthru
      _
    %185 = vsyncpa [#allocation3], 1
    %186 = vsyncpa [#allocation6], 1
    %187 = vsyncpa [#allocation4], 1

</llo_original>
